<compile_context>
chip_gen: v7x
topology: tpu7x:2x2x1
jax: 0.10.0
libtpu: 0.0.40
codegen_flags: <defaults>
</compile_context>

<pallas_src>
import jax
import jax.numpy as jnp
from jax.experimental import pallas as pl
from jax.experimental.pallas import tpu as pltpu


def _round_up(x: int, m: int) -> int:
    return ((x + m - 1) // m) * m


def _pick_step_budget_bytes() -> int:
    """Per-grid-step byte budget for the combined (x + out) blocks."""
    try:
        kind = jax.devices()[0].device_kind.lower()
    except Exception:  # pragma: no cover - defensive only
        kind = ""
    if "v7" in kind:
        return 8 << 20   # v7x: 3.2 TB/s HBM -> bigger tiles to beat step overhead
    if "v5" in kind:
        return 3 << 20   # v5e: lowest HBM BW + smallest scoped VMEM default
    return 4 << 20       # v6e / unknown


def _spatial_tiling(hw: int, c_in: int, c_out: int, itemsize: int):
    """Pick a lane-dense tile TN (multiple of 128) and the padded spatial extent.

    TN is chosen so that the per-step x+out blocks fit a VMEM byte budget, and the
    number of tiles is fixed first so padding waste stays < 128 lanes per tile.
    """
    budget = _pick_step_budget_bytes()
    hw128 = _round_up(hw, 128)

    tn_budget = (budget // (itemsize * (c_in + c_out))) // 128 * 128
    tn_budget = max(128, tn_budget)

    n_tiles = max(1, -(-hw128 // tn_budget))          # cdiv
    tn = _round_up(-(-hw // n_tiles), 128)            # cdiv(hw, n_tiles) -> mult of 128
    hw_pad = n_tiles * tn
    return tn, hw_pad, n_tiles


def outconv_kernel(w_ref, b_ref, x_ref, o_ref):
    """One (spatial-tile, batch) grid step.

    w_ref : VMEM (C_out, C_in)   x.dtype  1x1 conv weights (squeezed OIHW), resident
    b_ref : VMEM (C_out, 1)      f32      bias, resident
    x_ref : VMEM (1, C_in, TN)            lane-dense input tile
    o_ref : VMEM (1, C_out, TN)           lane-dense output tile
    """
    x = x_ref[0]                                                  # (C_in, TN)
    y = jnp.dot(w_ref[...], x, preferred_element_type=jnp.float32)  # MXU, f32 acc
    y = y + b_ref[...]                                            # (C_out,1) broadcast
    o_ref[0, :, :] = y.astype(o_ref.dtype)


def out_conv(x, weight, bias):
    """x: (B, C_in, H, W). weight: (C_out, C_in, 1, 1) OIHW. bias: (C_out,)."""
    B, C_in, H, W = x.shape
    C_out = weight.shape[0]
    HW = H * W
    itemsize = jnp.dtype(x.dtype).itemsize

    TN, HW_pad, n_tiles = _spatial_tiling(HW, C_in, C_out, itemsize)
    grid = (n_tiles, B)   # spatial tiles lead: even 2-TC split on v7x even for tiny B

    x2 = x.reshape(B, C_in, HW)                       # lane-dense spatial axis
    if HW_pad != HW:
        x2 = jnp.pad(x2, ((0, 0), (0, 0), (0, HW_pad - HW)))

    w2 = weight.reshape(C_out, C_in).astype(x.dtype)  # keep bf16 if x is bf16
    b2 = bias.reshape(C_out, 1).astype(jnp.float32)   # tiny; added in f32

    # Explicit VMEM budget: double-buffered x/out blocks + resident weights/bias.
    x_blk = C_in * TN * itemsize
    o_blk = C_out * TN * itemsize
    wb_bytes = C_out * C_in * itemsize + C_out * 4
    needed = 2 * (x_blk + o_blk) + 2 * wb_bytes
    vmem_limit = int(min(max(2 * needed, 16 << 20), 48 << 20))

    cost = pl.CostEstimate(
        flops=2 * B * C_out * C_in * HW + B * C_out * HW,
        transcendentals=0,
        bytes_accessed=itemsize * (B * C_in * HW + C_out * C_in + B * C_out * HW)
        + 4 * C_out,
    )

    out = pl.pallas_call(
        outconv_kernel,
        out_shape=jax.ShapeDtypeStruct((B, C_out, HW_pad), x.dtype),
        grid_spec=pltpu.PrefetchScalarGridSpec(
            num_scalar_prefetch=0,
            grid=grid,
            in_specs=[
                pl.BlockSpec((C_out, C_in), lambda s, b: (0, 0)),   # weights, resident
                pl.BlockSpec((C_out, 1), lambda s, b: (0, 0)),      # bias, resident
                pl.BlockSpec((1, C_in, TN), lambda s, b: (b, 0, s)),
            ],
            out_specs=pl.BlockSpec((1, C_out, TN), lambda s, b: (b, 0, s)),
        ),
        compiler_params=pltpu.CompilerParams(
            dimension_semantics=("parallel", "parallel"),
            vmem_limit_bytes=vmem_limit,
        ),
        cost_estimate=cost,
    )(w2, b2, x2)

    if HW_pad != HW:
        out = out[:, :, :HW]
    return out.reshape(B, C_out, H, W)


def reference(x, weight, bias):
    """Pure-JAX reference matching PyTorch Conv2d(kernel_size=1)."""
    y = jax.lax.conv_general_dilated(
        x, weight, window_strides=(1, 1), padding=[(0, 0), (0, 0)],
        dimension_numbers=("NCHW", "OIHW", "NCHW"))
    return y + bias.reshape(1, -1, 1, 1)


if __name__ == "__main__":
    key = jax.random.PRNGKey(0)
    kx, kw, kb = jax.random.split(key, 3)

    B, C_in, C_out, H, W = 2, 4, 2, 16, 16
    x = jax.random.normal(kx, (B, C_in, H, W), dtype=jnp.float32)

    # Deterministic synthetic parameters (Conv2d-like scale).
    fan_in = C_in * 1 * 1
    weight = jax.random.normal(kw, (C_out, C_in, 1, 1), dtype=jnp.float32) / (fan_in ** 0.5)
    bias = jax.random.normal(kb, (C_out,), dtype=jnp.float32) * 0.1

    out = out_conv(x, weight, bias)
    out = jax.block_until_ready(out)

    ref = reference(x, weight, bias)
    assert out.shape == (B, C_out, H, W), out.shape
    assert jnp.allclose(out, ref, atol=1e-5, rtol=1e-5), float(jnp.max(jnp.abs(out - ref)))

    # Also exercise a non-128-divisible spatial size (previously the VMEM-blowing fallback).
    H2, W2 = 13, 11
    x2 = jax.random.normal(kx, (B, C_in, H2, W2), dtype=jnp.float32)
    out2 = jax.block_until_ready(out_conv(x2, weight, bias))
    ref2 = reference(x2, weight, bias)
    assert jnp.allclose(out2, ref2, atol=1e-5, rtol=1e-5), float(jnp.max(jnp.abs(out2 - ref2)))

    print("KERNEL_OK")
</pallas_src>

<mosaic_0001>
module attributes {stable_mosaic.version = 11 : i64} {
  func.func @outconv_kernel(%arg0: i32, %arg1: i32, %arg2: memref<2x4xf32, #tpu.memory_space<vmem>>, %arg3: memref<2x1xf32, #tpu.memory_space<vmem>>, %arg4: memref<1x4x256xf32, #tpu.memory_space<vmem>>, %arg5: memref<1x2x256xf32, #tpu.memory_space<vmem>>) attributes {dimension_semantics = [#tpu.dimension_semantics<parallel>, #tpu.dimension_semantics<parallel>], iteration_bounds = array<i64: 1, 2>, scalar_prefetch = 0 : i64, scratch_operands = 0 : i64, tpu.core_type = #tpu.core_type<tc>, window_params = [{pipeline_mode = #tpu.pipeline_mode<synchronous>, transform_indices = @transform_0, window_bounds = array<i64: 2, 4>}, {pipeline_mode = #tpu.pipeline_mode<synchronous>, transform_indices = @transform_1, window_bounds = array<i64: 2, 1>}, {transform_indices = @transform_2, window_bounds = array<i64: 1, 4, 256>}, {transform_indices = @transform_3, window_bounds = array<i64: 1, 2, 256>}]} {
    %c0 = arith.constant 0 : index
    %c0_0 = arith.constant 0 : index
    %c0_1 = arith.constant 0 : index
    %0 = vector.load %arg4[%c0, %c0_0, %c0_1] : memref<1x4x256xf32, #tpu.memory_space<vmem>>, vector<1x4x256xf32>
    %1 = vector.shape_cast %0 : vector<1x4x256xf32> to vector<4x256xf32>
    %c0_2 = arith.constant 0 : index
    %c0_3 = arith.constant 0 : index
    %2 = vector.load %arg2[%c0_2, %c0_3] : memref<2x4xf32, #tpu.memory_space<vmem>>, vector<2x4xf32>
    %cst = arith.constant dense<0.000000e+00> : vector<2x256xf32>
    %3 = tpu.matmul %2, %1, %cst {dimension_numbers = #tpu.dot_dimension_numbers<[1], [0], [0], [1], [0, 0, 1, 1], [], []>} : vector<2x4xf32>, vector<4x256xf32>, vector<2x256xf32> -> vector<2x256xf32>
    %c0_4 = arith.constant 0 : index
    %c0_5 = arith.constant 0 : index
    %4 = vector.load %arg3[%c0_4, %c0_5] : memref<2x1xf32, #tpu.memory_space<vmem>>, vector<2x1xf32>
    %5 = vector.broadcast %4 : vector<2x1xf32> to vector<2x256xf32>
    %6 = arith.addf %3, %5 : vector<2x256xf32>
    %c0_6 = arith.constant 0 : index
    %c0_7 = arith.constant 0 : index
    %c0_8 = arith.constant 0 : index
    %7 = vector.load %arg5[%c0_6, %c0_7, %c0_8] : memref<1x2x256xf32, #tpu.memory_space<vmem>>, vector<1x2x256xf32>
    %8 = vector.shape_cast %7 : vector<1x2x256xf32> to vector<2x256xf32>
    %9 = vector.shape_cast %6 : vector<2x256xf32> to vector<1x2x256xf32>
    tpu.vector_store %arg5[%c0_6, %c0_7, %c0_8], %9 {strides = array<i32>} : memref<1x2x256xf32, #tpu.memory_space<vmem>>, vector<1x2x256xf32>,
    return
  }
  func.func @transform_0(%arg0: i32, %arg1: i32) -> (i32, i32) {
    %c0_i32 = arith.constant 0 : i32
    %c0_i32_0 = arith.constant 0 : i32
    %c0_i32_1 = arith.constant 0 : i32
    return %c0_i32, %c0_i32_0 : i32, i32
  }
  func.func @transform_1(%arg0: i32, %arg1: i32) -> (i32, i32) {
    %c0_i32 = arith.constant 0 : i32
    %c0_i32_0 = arith.constant 0 : i32
    %c0_i32_1 = arith.constant 0 : i32
    return %c0_i32, %c0_i32_0 : i32, i32
  }
  func.func @transform_2(%arg0: i32, %arg1: i32) -> (i32, i32, i32) {
    %c0_i32 = arith.constant 0 : i32
    %c0_i32_0 = arith.constant 0 : i32
    return %arg1, %c0_i32, %arg0 : i32, i32, i32
  }
  func.func @transform_3(%arg0: i32, %arg1: i32) -> (i32, i32, i32) {
    %c0_i32 = arith.constant 0 : i32
    %c0_i32_0 = arith.constant 0 : i32
    return %arg1, %c0_i32, %arg0 : i32, i32, i32
  }
}

</mosaic_0001>

<llo_original>
// kernel: tpu_custom_call.1
$region0: #{tpu_custom_call.1}
  #allocation0 [shape = 'u32[]', space=smem, size = 0x4, offset = 0x4, fixed_abs, tag = 'smem constant byte address 0x4 - core index']
  #allocation1 [shape = 'u32[144,128]{1,0:T(1,128)}', space=vmem, size = 0x12000, scoped, tag = 'internal scratch']
  %s0 = inlined_call_operand.vmem [shape: f32[2,4], index: 0, kind: input, shape index: {}]
  %s1 = inlined_call_operand.vmem [shape: f32[2,1], index: 1, kind: input, shape index: {}]
  %s2 = inlined_call_operand.hbm [shape: f32[2,4,256], index: 2, kind: input, shape index: {}]
  %s3 = inlined_call_operand.hbm [shape: f32[2,2,256], index: 3, kind: output, shape index: {}]
  %s4 = sld [smem:[#allocation0]]
  $region49: #{tpu_custom_call.1} parent=0
    _
  %s6 = ssub.s32 1, %s4
  %s7 = scalar_select 0, %s6, %s4
  $region1: #{tpu_custom_call.1} parent=0
    #allocation2 [shape = 'u8[8192]{0}', space=vmem, size = 0x2000, scoped, tag = 'input window, operand 2']
    #allocation3 [shape = 's32[2]{0}', space=sflag, size = 0x8, scoped, tag = 'scoped memory for tpu_custom_call.1']
    #allocation4 [shape = 's32[2]{0}', space=sflag, size = 0x8, scoped, tag = 'scoped memory for tpu_custom_call.1']
    #allocation5 [shape = 'u8[4096]{0}', space=vmem, size = 0x1000, scoped, tag = 'output window, operand 0']
    %8 = vsyncpa [#allocation3], 0
    %s9 = scalar_lea.sflag [#allocation3], 1
    %10 = vsyncpa %s9, 0
    %11 = vsyncpa [#allocation4], 0
    %s12 = scalar_lea.sflag [#allocation4], 1
    %13 = vsyncpa %s12, 0
    loop: start=0, step=1, limit=4
    $region2: #{tpu_custom_call.1} parent=1 // loop_pre_header
      _
    $region3: #{tpu_custom_call.1} parent=1 // loop_header
      %s15 = sphi 0, %s19
      %p16 = scmp.ge.s32.totalorder %s15, 4
      %s22 = sphi 0, %s34
      %s23 = sphi 0, %s30
      %s24 = sphi 0, %s22
      %s25 = sphi 0, %s23
      %s26 = sphi 0, %s24
      %s27 = sphi 0, %s25
      %s35 = sphi 0, %s35
      %s37 = sphi 0, %s35
      %s38 = sphi 0, %s37
      %s52 = sphi 0, %s38
      %s56 = sphi 0, %s56
      %s58 = sphi 0, %s56
      %s59 = sphi 0, %s58
      %s73 = sphi 0, %s59
      %s81 = sphi 0, %s83
      %s84 = sphi 0, %s81
      %s85 = sphi 0, %s84
      %s101 = sphi 0, %s85
      %s109 = sphi 0, %s111
      %s112 = sphi 0, %s109
      %s113 = sphi 0, %s112
      %s129 = sphi 0, %s113
    $region4: #{tpu_custom_call.1} parent=1 // loop_header_branch
      %18 = sbr.rel (%p16) target = $region8
    $region5: #{tpu_custom_call.1} parent=1 // loop_body
      %s20 = ssub.s32 %s15, 1
      %s21 = ssub.s32 %s15, 2
      %s28 = sadd.s32 1, %s23
      %p29 = scmp.ge.s32.totalorder %s28, 2
      %s30 = scalar_select %p29, 0, %s28
      %s31 = sadd.s32 1, %s22
      %s32 = scalar_select %p29, %s31, %s22
      %p33 = scmp.ge.s32.totalorder %s32, 1
      %s34 = scalar_select %p33, 0, %s32
      %s36 = sadd.s32 %s35, 1
      %p39 = scmp.eq.s32.totalorder %s15, 1
      %p40 = scmp.ne.s32.totalorder %s35, %s37
      %p41 = scmp.eq.s32.totalorder %s15, 0
      %p42 = por %p40, %p41
      %p43 = scmp.ne.s32.totalorder %s35, %s37
      %p44 = scmp.eq.s32.totalorder %s20, 1
      %p45 = por %p43, %p44
      %p46 = scmp.ne.s32.totalorder %s37, %s38
      %p47 = scmp.eq.s32.totalorder %s20, 0
      %p48 = por %p46, %p47
      %p49 = scmp.ne.s32.totalorder %s37, %s38
      %p50 = scmp.eq.s32.totalorder %s21, 1
      %p51 = por %p49, %p50
      %p53 = scmp.ne.s32.totalorder %s38, %s52
      %p54 = scmp.eq.s32.totalorder %s21, 0
      %p55 = por %p53, %p54
      %s57 = sadd.s32 %s56, 1
      %p60 = scmp.eq.s32.totalorder %s15, 1
      %p61 = scmp.ne.s32.totalorder %s56, %s58
      %p62 = scmp.eq.s32.totalorder %s15, 0
      %p63 = por %p61, %p62
      %p64 = scmp.ne.s32.totalorder %s56, %s58
      %p65 = scmp.eq.s32.totalorder %s20, 1
      %p66 = por %p64, %p65
      %p67 = scmp.ne.s32.totalorder %s58, %s59
      %p68 = scmp.eq.s32.totalorder %s20, 0
      %p69 = por %p67, %p68
      %p70 = scmp.ne.s32.totalorder %s58, %s59
      %p71 = scmp.eq.s32.totalorder %s21, 1
      %p72 = por %p70, %p71
      %p74 = scmp.ne.s32.totalorder %s59, %s73
      %p75 = scmp.eq.s32.totalorder %s21, 0
      %p76 = por %p74, %p75
      %s77 = ssub.s32 %s23, %s30
      %s78 = ssub.s32 %s22, %s34
      %s79 = sor.u32 %s77, %s78
      %p80 = scmp.eq.s32.totalorder %s79, 0
      %s82 = sadd.s32 %s81, 1
      %s83 = scalar_select %p80, %s81, %s82
      %p86 = pneg %p80
      %p87 = scmp.eq.s32.totalorder %s15, 1
      %p88 = por %p86, %p87
      %p89 = scmp.ne.s32.totalorder %s81, %s84
      %p90 = scmp.eq.s32.totalorder %s15, 0
      %p91 = por %p89, %p90
      %p92 = scmp.ne.s32.totalorder %s81, %s84
      %p93 = scmp.eq.s32.totalorder %s20, 1
      %p94 = por %p92, %p93
      %p95 = scmp.ne.s32.totalorder %s84, %s85
      %p96 = scmp.eq.s32.totalorder %s20, 0
      %p97 = por %p95, %p96
      %p98 = scmp.ne.s32.totalorder %s84, %s85
      %p99 = scmp.eq.s32.totalorder %s21, 1
      %p100 = por %p98, %p99
      %p102 = scmp.ne.s32.totalorder %s85, %s101
      %p103 = scmp.eq.s32.totalorder %s21, 0
      %p104 = por %p102, %p103
      %s105 = ssub.s32 %s23, %s30
      %s106 = ssub.s32 %s22, %s34
      %s107 = sor.u32 %s105, %s106
      %p108 = scmp.eq.s32.totalorder %s107, 0
      %s110 = sadd.s32 %s109, 1
      %s111 = scalar_select %p108, %s109, %s110
      %p114 = pneg %p108
      %p115 = scmp.eq.s32.totalorder %s15, 1
      %p116 = por %p114, %p115
      %p117 = scmp.ne.s32.totalorder %s109, %s112
      %p118 = scmp.eq.s32.totalorder %s15, 0
      %p119 = por %p117, %p118
      %p120 = scmp.ne.s32.totalorder %s109, %s112
      %p121 = scmp.eq.s32.totalorder %s20, 1
      %p122 = por %p120, %p121
      %p123 = scmp.ne.s32.totalorder %s112, %s113
      %p124 = scmp.eq.s32.totalorder %s20, 0
      %p125 = por %p123, %p124
      %p126 = scmp.ne.s32.totalorder %s112, %s113
      %p127 = scmp.eq.s32.totalorder %s21, 1
      %p128 = por %p126, %p127
      %p130 = scmp.ne.s32.totalorder %s113, %s129
      %p131 = scmp.eq.s32.totalorder %s21, 0
      %p132 = por %p130, %p131
      %p133 = scmp.le.s32.totalorder 1, %s15
      %p134 = scmp.lt.s32.totalorder %s15, 3
      %p135 = pnand %p133, %p134
      %p136 = pneg %p135
      // Predicated region
      $region9: #{tpu_custom_call.1} parent=5 // pred_check
        _
      $region10: #{tpu_custom_call.1} parent=5 // pred_check_branch
        %138 = sbr.rel (%p135) target = $region12
      $region11: #{tpu_custom_call.1} parent=5 // pred_region
        %s139 = ssub.s32 %s15, 1
        // Predicated region
        $region13: #{tpu_custom_call.1} parent=11 // pred_check
          %p140 = pneg %p48
        $region14: #{tpu_custom_call.1} parent=11 // pred_check_branch
          %142 = sbr.rel (%p140) target = $region16
        $region15: #{tpu_custom_call.1} parent=11 // pred_region
          _
        $region16: #{tpu_custom_call.1} parent=11 // pred_fallthru
          _
        // Predicated region
        $region17: #{tpu_custom_call.1} parent=11 // pred_check
          %p143 = pneg %p69
        $region18: #{tpu_custom_call.1} parent=11 // pred_check_branch
          %145 = sbr.rel (%p143) target = $region20
        $region19: #{tpu_custom_call.1} parent=11 // pred_region
          _
        $region20: #{tpu_custom_call.1} parent=11 // pred_fallthru
          _
      $region12: #{tpu_custom_call.1} parent=5 // pred_fallthru
        _
      %p146 = scmp.lt.s32.totalorder %s15, 2
      // Predicated region
      $region21: #{tpu_custom_call.1} parent=5 // pred_check
        %p147 = pneg %p146
      $region22: #{tpu_custom_call.1} parent=5 // pred_check_branch
        %149 = sbr.rel (%p147) target = $region24
      $region23: #{tpu_custom_call.1} parent=5 // pred_region
        // Predicated region
        $region25: #{tpu_custom_call.1} parent=23 // pred_check
          %p150 = pneg %p91
        $region26: #{tpu_custom_call.1} parent=23 // pred_check_branch
          %152 = sbr.rel (%p150) target = $region28
        $region27: #{tpu_custom_call.1} parent=23 // pred_region
          %s153 = sand.u32 %s81, 1
          %s154 = scalar_lea.sflag [#allocation3], %s153
          %s155 = sand.u32 %s81, 1
          %s156 = smul.addr %s155, 8
          %s157 = scalar_lea.vmem [#allocation2], %s156
          %s158 = smul.u32 2, %s22
          %s160 = ssub.s32 128, 128
          %161 = vsyncadd %s154, %s160
          %s162 = smul.addr %s23, 2
          %s163 = sadd.s32 %s158, %s162
          %s164 = smul.addr %s163, 64
          %s165 = scalar_lea.hbm %s2, %s164
          %s167 = sshll.u32 %s157, 4
          %s168 = int_to_ptr.vmem [resolvable:$true] %s167
          %170 = dma.hbm_to_vmem [thread:$0]  %s165, 128, %s168, %s154
        $region28: #{tpu_custom_call.1} parent=23 // pred_fallthru
          _
      $region24: #{tpu_custom_call.1} parent=5 // pred_fallthru
        _
      %p171 = scmp.le.s32.totalorder 1, %s15
      %p172 = scmp.lt.s32.totalorder %s15, 3
      %p173 = pnand %p171, %p172
      %p174 = pneg %p173
      // Predicated region
      $region29: #{tpu_custom_call.1} parent=5 // pred_check
        _
      $region30: #{tpu_custom_call.1} parent=5 // pred_check_branch
        %176 = sbr.rel (%p173) target = $region32
      $region31: #{tpu_custom_call.1} parent=5 // pred_region
        %s177 = ssub.s32 %s15, 1
        %s178 = sand.u32 %s84, 1
        %s179 = scalar_lea.sflag [#allocation3], %s178
        %s180 = sand.u32 %s84, 1
        %s181 = smul.addr %s180, 8
        %s182 = scalar_lea.vmem [#allocation2], %s181
        // Predicated region
        $region33: #{tpu_custom_call.1} parent=31 // pred_check
          %p183 = pneg %p97
        $region34: #{tpu_custom_call.1} parent=31 // pred_check_branch
          %185 = sbr.rel (%p183) target = $region36
        $region35: #{tpu_custom_call.1} parent=31 // pred_region
          %186 = dma.done %s179, 128
        $region36: #{tpu_custom_call.1} parent=31 // pred_fallthru
          _
        %p187 = pneg %p48
        %p188 = pneg %p45
        %p189 = pneg %p69
        %p190 = pneg %p66
        %s191 = sand.u32 %s84, 1
        %s192 = scalar_lea.sflag [#allocation3], %s191
        %s193 = sand.u32 %s84, 1
        %s194 = smul.addr %s193, 8
        %s195 = scalar_lea.vmem [#allocation2], %s194
        %p196 = pneg %p97
        %p197 = pneg %p94
        %p198 = pneg %p125
        %p199 = pneg %p122
        %s200 = sand.u32 %s112, 1
        %s201 = scalar_lea.sflag [#allocation4], %s200
        %s202 = sand.u32 %s112, 1
        %s203 = smul.addr %s202, 4
        %s204 = scalar_lea.vmem [#allocation5], %s203
        %s205 = smul.u32 2, %s24
        %s206 = smul.u32 2, %s24
        %v207 = vld [vmem:[%s182] sm:$0xff]
        %v208 = vld [vmem:[%s0] sm:$0x3]
        %v209 = vld [vmem:[%s1] sm:$0x3]
        %211 = vset.pattern.permute.xlu0 0
        %212 = vperm.xlu0 %211, %v209
        %v213 = vpop.permute.xlu0 %212
        %v216 = vcombine.high %v207, %v207
        %vm217 = vcmask 31744
        %v219 = vsel %vm217, %v208, 0
        %vm221 = vcmask 1043456
        %v222 = vsel %vm221, %v207, 0
        %v224 = vsel %vm221, %v216, 0
        %226 = vmatprep.subr.mxu0 %v224
        %227 = vmatpush1.msra.mxu0 %v222
        %228 = vmatprep.subr.mxu0 0.0
        %229 = vmatpush1.msra.mxu0 0.0
        %230 = vmatprep.subr.mxu0 0.0
        %231 = vmatpush1.msra.mxu0 0.0
        %232 = vmatprep.subr.mxu0 0.0
        %233 = vmatpush1.msra.mxu0 0.0
        %234 = vmatprep.subr.mxu0 0.0
        %235 = vmatpush1.msra.mxu0 0.0
        %236 = vmatprep.subr.mxu0 0.0
        %237 = vmatpush1.msra.mxu0 0.0
        %238 = vmatprep.subr.mxu0 0.0
        %239 = vmatpush1.msra.mxu0 0.0
        %240 = vmatprep.subr.mxu0 0.0
        %241 = vmatpush1.msra.mxu0 0.0
        %242 = vmatprep.subr.mxu0 0.0
        %243 = vmatpush1.msra.mxu0 0.0
        %244 = vmatprep.subr.mxu0 0.0
        %245 = vmatpush1.msra.mxu0 0.0
        %246 = vmatprep.subr.mxu0 0.0
        %247 = vmatpush1.msra.mxu0 0.0
        %248 = vmatprep.subr.mxu0 0.0
        %249 = vmatpush1.msra.mxu0 0.0
        %250 = vmatprep.subr.mxu0 0.0
        %251 = vmatpush1.msra.mxu0 0.0
        %252 = vmatprep.subr.mxu0 0.0
        %253 = vmatpush1.msra.mxu0 0.0
        %254 = vmatprep.subr.mxu0 0.0
        %255 = vmatpush1.msra.mxu0 0.0
        %256 = vmatprep.subr.mxu0 0.0
        %257 = vmatpush1.msra.mxu0 0.0
        %258 = vmatprep.subr.mxu0 0.0
        %259 = vmatpush1.msra.mxu0 0.0
        %260 = vmatprep.subr.mxu0 0.0
        %261 = vmatpush1.msra.mxu0 0.0
        %262 = vmatprep.subr.mxu0 0.0
        %263 = vmatpush1.msra.mxu0 0.0
        %264 = vmatprep.subr.mxu0 0.0
        %265 = vmatpush1.msra.mxu0 0.0
        %266 = vmatprep.subr.mxu0 0.0
        %267 = vmatpush1.msra.mxu0 0.0
        %268 = vmatprep.subr.mxu0 0.0
        %269 = vmatpush1.msra.mxu0 0.0
        %270 = vmatprep.subr.mxu0 0.0
        %271 = vmatpush1.msra.mxu0 0.0
        %272 = vmatprep.subr.mxu0 0.0
        %273 = vmatpush1.msra.mxu0 0.0
        %274 = vmatprep.subr.mxu0 0.0
        %275 = vmatpush1.msra.mxu0 0.0
        %276 = vmatprep.subr.mxu0 0.0
        %277 = vmatpush1.msra.mxu0 0.0
        %278 = vmatprep.subr.mxu0 0.0
        %279 = vmatpush1.msra.mxu0 0.0
        %280 = vmatprep.subr.mxu0 0.0
        %281 = vmatpush1.msra.mxu0 0.0
        %282 = vmatprep.subr.mxu0 0.0
        %283 = vmatpush1.msra.mxu0 0.0
        %284 = vmatprep.subr.mxu0 0.0
        %285 = vmatpush1.msra.mxu0 0.0
        %286 = vmatprep.subr.mxu0 0.0
        %287 = vmatpush1.msra.mxu0 0.0
        %288 = vmatprep.subr.mxu0 0.0
        %289 = vmatpush1.msra.mxu0 0.0
        %290 = vmatprep.mubr.f32.mxu0 0.0
        %291 = vmatmul.mubr.f32.gmra.mrb[0].mxu0 %v219
        %v292 = vpop.f32.mrb[0].mxu0
        %v293 = vadd.f32 %v213, %v292
        %v294 = vpop.f32.mrb[0].mxu0
        %v295 = vadd.f32 %v213, %v294
        %296 = vdwg.mxu0
        %v299 = vcombine.low %v293, %v295
        %v301 = vunpack.c.l.s4 1983009808
        %v302 = vunpack.c.0.s8 %v301
        %v303 = vlaneseq
        %v304 = vshrl.u32 %v303, 7
        %v305 = vsub.s32 %v302, %v304
        %v306 = vrot.slane %v299, %v305
        %308 = vst [vmem:[%s204] sm:$0xf] %v306
        %s309 = sand.u32 %s112, 1
        %s310 = scalar_lea.sflag [#allocation4], %s309
        %s311 = sand.u32 %s112, 1
        %s312 = smul.addr %s311, 4
        %s313 = scalar_lea.vmem [#allocation5], %s312
        // Predicated region
        $region37: #{tpu_custom_call.1} parent=31 // pred_check
          %p314 = pneg %p122
        $region38: #{tpu_custom_call.1} parent=31 // pred_check_branch
          %316 = sbr.rel (%p314) target = $region40
        $region39: #{tpu_custom_call.1} parent=31 // pred_region
          %s317 = smul.u32 2, %s24
          %s319 = ssub.s32 64, 64
          %320 = vsyncadd %s310, %s319
          %s321 = smul.addr %s25, 2
          %s322 = sadd.s32 %s317, %s321
          %s323 = smul.addr %s322, 32
          %s324 = scalar_lea.hbm %s3, %s323
          %s326 = sshll.u32 %s313, 4
          %s327 = int_to_ptr.vmem [resolvable:$true] %s326
          %329 = dma.vmem_to_hbm [thread:$0]  %s327, 64, %s324, %s310
        $region40: #{tpu_custom_call.1} parent=31 // pred_fallthru
          _
      $region32: #{tpu_custom_call.1} parent=5 // pred_fallthru
        _
      %p330 = scmp.le.s32.totalorder 2, %s15
      // Predicated region
      $region41: #{tpu_custom_call.1} parent=5 // pred_check
        %p331 = pneg %p330
      $region42: #{tpu_custom_call.1} parent=5 // pred_check_branch
        %333 = sbr.rel (%p331) target = $region44
      $region43: #{tpu_custom_call.1} parent=5 // pred_region
        %s334 = ssub.s32 %s15, 2
        // Predicated region
        $region45: #{tpu_custom_call.1} parent=43 // pred_check
          %p335 = pneg %p128
        $region46: #{tpu_custom_call.1} parent=43 // pred_check_branch
          %337 = sbr.rel (%p335) target = $region48
        $region47: #{tpu_custom_call.1} parent=43 // pred_region
          %s338 = sand.u32 %s113, 1
          %s339 = scalar_lea.sflag [#allocation4], %s338
          %s340 = sand.u32 %s113, 1
          %s341 = smul.addr %s340, 4
          %s342 = scalar_lea.vmem [#allocation5], %s341
          %343 = dma.done %s339, 64
        $region48: #{tpu_custom_call.1} parent=43 // pred_fallthru
          _
      $region44: #{tpu_custom_call.1} parent=5 // pred_fallthru
        _
    $region6: #{tpu_custom_call.1} parent=1 // loop_footer
      %s19 = sadd.s32 1, %s15
    $region7: #{tpu_custom_call.1} parent=1 // loop_footer_branch
      %14 = sbr.rel target = $region3
    $region8: #{tpu_custom_call.1} parent=1 // loop_exit
      _
    %344 = vsyncpa [#allocation3], 1
    %s345 = scalar_lea.sflag [#allocation3], 1
    %346 = vsyncpa %s345, 1
    %347 = vsyncpa [#allocation4], 1
    %s348 = scalar_lea.sflag [#allocation4], 1
    %349 = vsyncpa %s348, 1

</llo_original>
